<compile_context>
chip_gen: v7x
topology: tpu7x:2x2x1
jax: 0.10.0
libtpu: 0.0.40
codegen_flags: <defaults>
</compile_context>

<pallas_src>
import jax
import jax.numpy as jnp
from jax.experimental import pallas as pl
from jax.experimental.pallas import tpu as pltpu


def _round_up(x, m):
    return (x + m - 1) // m * m


def conv_to_pc_kernel(x_ref, w1_ref, b1_ref, w2_ref, b2_ref, out_ref):
    # x_ref:  (C_pad, TILE_P) f32   (channels on sublanes, pixels on lanes)
    # w1_ref: (C_pad, C_pad) bf16,     b1_ref: (C_pad, 1) f32
    # w2_ref: (C_OUT_PAD, C_pad) bf16, b2_ref: (C_OUT_PAD, 1) f32
    # out_ref:(C_OUT_PAD, TILE_P) f32
    x = x_ref[...].astype(jnp.bfloat16)          # f32 -> bf16 cast; VPU work hidden under DMA/MXU

    # conv1: 1x1 conv + bias + ReLU  (bf16 MXU inputs, f32 accumulate, f32 epilogue)
    h = jnp.dot(w1_ref[...], x, preferred_element_type=jnp.float32)       # (C_pad, TILE_P) f32
    h = jnp.maximum(h + b1_ref[...], 0.0).astype(jnp.bfloat16)

    # conv2: 1x1 conv + bias, no activation; output channels padded 3 -> 8
    y = jnp.dot(w2_ref[...], h, preferred_element_type=jnp.float32)       # (C_OUT_PAD, TILE_P) f32
    out_ref[...] = y + b2_ref[...]


def conv_to_pc_forward(params, x, *, tile_p=2048):
    """params = ((w1, b1), (w2, b2)) with w1:(C,C), b1:(C,), w2:(3,C), b2:(3,).
    x: (B, C, H, W) float32 (PyTorch NCHW).  Returns (B, 3, H, W) float32."""
    (w1, b1), (w2, b2) = params
    B, C, H, W = x.shape
    P = H * W
    C_OUT = w2.shape[0]                  # 3

    C_pad = _round_up(C, 16)             # bf16 sublane pack only; NOT 128 (x bytes dominate)
    C_OUT_PAD = 8                        # f32 sublane minimum; lanes stay the pixel tile
    P_pad = _round_up(P, 128)            # lane alignment only; ragged tiles handle the rest

    # Channels-first, flattened pixels (pure reshape, no transpose).  Pad only if misaligned.
    x_flat = x.reshape(B, C, P)
    if C_pad != C or P_pad != P:
        x_flat = jnp.pad(x_flat, ((0, 0), (0, C_pad - C), (0, P_pad - P)))

    TILE_P = min(tile_p, P_pad)
    n_p = pl.cdiv(P_pad, TILE_P)
    # v7x has 2 TensorCores: make sure a B == 1 call still exposes >= 2 parallel grid steps.
    if B == 1 and n_p < 2 and P_pad >= 256:
        TILE_P = _round_up(pl.cdiv(P_pad, 2), 128)
        n_p = pl.cdiv(P_pad, TILE_P)

    # Zero-padding of weights/biases is mathematically exact (padded channels stay zero).
    w1_p = jnp.pad(w1, ((0, C_pad - C), (0, C_pad - C))).astype(jnp.bfloat16)
    b1_p = jnp.pad(b1, (0, C_pad - C)).astype(jnp.float32).reshape(C_pad, 1)
    w2_p = jnp.pad(w2, ((0, C_OUT_PAD - C_OUT), (0, C_pad - C))).astype(jnp.bfloat16)
    b2_p = jnp.pad(b2, (0, C_OUT_PAD - C_OUT)).astype(jnp.float32).reshape(C_OUT_PAD, 1)

    grid = (B, n_p)

    flops = 2 * B * P_pad * (C_pad * C_pad + C_pad * C_OUT_PAD)
    bytes_accessed = (B * C_pad * P_pad * 4              # x (f32, read once, no extra pass)
                      + w1_p.size * 2 + w2_p.size * 2
                      + b1_p.size * 4 + b2_p.size * 4
                      + B * C_OUT_PAD * P_pad * 4)        # out (f32)
    cost = pl.CostEstimate(flops=flops, transcendentals=0, bytes_accessed=bytes_accessed)

    def const_spec(arr):
        nd = arr.ndim
        return pl.BlockSpec(arr.shape, lambda b, p, _nd=nd: (0,) * _nd)

    out = pl.pallas_call(
        conv_to_pc_kernel,
        out_shape=jax.ShapeDtypeStruct((B, C_OUT_PAD, P_pad), jnp.float32),
        grid=grid,
        in_specs=[
            pl.BlockSpec((pl.Squeezed(), C_pad, TILE_P), lambda b, p: (b, 0, p)),
            const_spec(w1_p), const_spec(b1_p),
            const_spec(w2_p), const_spec(b2_p),
        ],
        out_specs=pl.BlockSpec((pl.Squeezed(), C_OUT_PAD, TILE_P), lambda b, p: (b, 0, p)),
        compiler_params=pltpu.CompilerParams(
            dimension_semantics=("parallel", "parallel"),
            vmem_limit_bytes=32 * 1024 * 1024),
        cost_estimate=cost,
    )(x_flat, w1_p, b1_p, w2_p, b2_p)

    # Slice padded channels / pixels back to the PyTorch output shape (B, 3, H, W).
    return out[:, :C_OUT, :P].reshape(B, C_OUT, H, W)


def conv_to_pc_reference(params, x):
    """Pure-JAX f32 reference (validation only)."""
    (w1, b1), (w2, b2) = params
    B, C, H, W = x.shape
    xf = x.reshape(B, C, H * W)
    h = jnp.einsum('oc,bcp->bop', w1, xf) + b1[None, :, None]
    h = jnp.maximum(h, 0.0)
    y = jnp.einsum('oc,bcp->bop', w2, h) + b2[None, :, None]
    return y.reshape(B, w2.shape[0], H, W)


if __name__ == "__main__":
    key = jax.random.PRNGKey(0)

    def make_params(k, C):
        ks = jax.random.split(k, 4)
        bound = 1.0 / (C ** 0.5)  # PyTorch Conv2d default init (fan_in = C for k=1)
        w1 = jax.random.uniform(ks[0], (C, C), jnp.float32, -bound, bound)   # conv1.weight
        b1 = jax.random.uniform(ks[1], (C,), jnp.float32, -bound, bound)     # conv1.bias
        w2 = jax.random.uniform(ks[2], (3, C), jnp.float32, -bound, bound)   # conv2.weight
        b2 = jax.random.uniform(ks[3], (3,), jnp.float32, -1.0, 1.0)         # conv2.bias ~ U(-1,1)
        return ((w1, b1), (w2, b2))

    # Case 1: aligned (C % 16 == 0, P % 128 == 0) -> pad-free fast path.
    # Case 2: unaligned C & P with B == 1 -> exercises padding and the dual-TC tile split.
    for (B, C, H, W) in [(2, 96, 16, 16), (1, 40, 12, 12)]:
        kp, kx, key = jax.random.split(key, 3)
        params = make_params(kp, C)
        x = jax.random.normal(kx, (B, C, H, W), jnp.float32)

        out = jax.block_until_ready(conv_to_pc_forward(params, x))
        assert out.shape == (B, 3, H, W), out.shape

        ref = conv_to_pc_reference(params, x)
        max_err = float(jnp.max(jnp.abs(out - ref)))
        # bf16 matmul inputs with f32 accumulation vs an all-f32 reference
        assert jnp.allclose(out, ref, rtol=5e-2, atol=5e-2), (B, C, H, W, max_err)

    print("KERNEL_OK")
</pallas_src>

<mosaic_0001>
module attributes {stable_mosaic.version = 11 : i64} {
  func.func @conv_to_pc_kernel(%arg0: i32, %arg1: i32, %arg2: memref<1x96x256xf32, #tpu.memory_space<vmem>>, %arg3: memref<96x96xbf16, #tpu.memory_space<vmem>>, %arg4: memref<96x1xf32, #tpu.memory_space<vmem>>, %arg5: memref<8x96xbf16, #tpu.memory_space<vmem>>, %arg6: memref<8x1xf32, #tpu.memory_space<vmem>>, %arg7: memref<1x8x256xf32, #tpu.memory_space<vmem>>) attributes {dimension_semantics = [#tpu.dimension_semantics<parallel>, #tpu.dimension_semantics<parallel>], iteration_bounds = array<i64: 2, 1>, scalar_prefetch = 0 : i64, scratch_operands = 0 : i64, tpu.core_type = #tpu.core_type<tc>, window_params = [{transform_indices = @transform_0, window_bounds = array<i64: 1, 96, 256>}, {pipeline_mode = #tpu.pipeline_mode<synchronous>, transform_indices = @transform_1, window_bounds = array<i64: 96, 96>}, {pipeline_mode = #tpu.pipeline_mode<synchronous>, transform_indices = @transform_2, window_bounds = array<i64: 96, 1>}, {pipeline_mode = #tpu.pipeline_mode<synchronous>, transform_indices = @transform_3, window_bounds = array<i64: 8, 96>}, {pipeline_mode = #tpu.pipeline_mode<synchronous>, transform_indices = @transform_4, window_bounds = array<i64: 8, 1>}, {transform_indices = @transform_5, window_bounds = array<i64: 1, 8, 256>}]} {
    %c0 = arith.constant 0 : index
    %c0_0 = arith.constant 0 : index
    %c0_1 = arith.constant 0 : index
    %0 = vector.load %arg2[%c0, %c0_0, %c0_1] : memref<1x96x256xf32, #tpu.memory_space<vmem>>, vector<1x96x256xf32>
    %1 = vector.shape_cast %0 : vector<1x96x256xf32> to vector<96x256xf32>
    %2 = arith.truncf %1 : vector<96x256xf32> to vector<96x256xbf16>
    %c0_2 = arith.constant 0 : index
    %c0_3 = arith.constant 0 : index
    %3 = vector.load %arg3[%c0_2, %c0_3] : memref<96x96xbf16, #tpu.memory_space<vmem>>, vector<96x96xbf16>
    %cst = arith.constant dense<0.000000e+00> : vector<96x256xf32>
    %4 = tpu.matmul %3, %2, %cst {dimension_numbers = #tpu.dot_dimension_numbers<[1], [0], [0], [1], [0, 0, 1, 1], [], []>} : vector<96x96xbf16>, vector<96x256xbf16>, vector<96x256xf32> -> vector<96x256xf32>
    %c0_4 = arith.constant 0 : index
    %c0_5 = arith.constant 0 : index
    %5 = vector.load %arg4[%c0_4, %c0_5] : memref<96x1xf32, #tpu.memory_space<vmem>>, vector<96x1xf32>
    %6 = vector.broadcast %5 : vector<96x1xf32> to vector<96x256xf32>
    %7 = arith.addf %4, %6 : vector<96x256xf32>
    %cst_6 = arith.constant 0.000000e+00 : f32
    %8 = vector.broadcast %cst_6 : f32 to vector<96x256xf32>
    %9 = arith.maximumf %7, %8 : vector<96x256xf32>
    %10 = arith.truncf %9 : vector<96x256xf32> to vector<96x256xbf16>
    %c0_7 = arith.constant 0 : index
    %c0_8 = arith.constant 0 : index
    %11 = vector.load %arg5[%c0_7, %c0_8] : memref<8x96xbf16, #tpu.memory_space<vmem>>, vector<8x96xbf16>
    %cst_9 = arith.constant dense<0.000000e+00> : vector<8x256xf32>
    %12 = tpu.matmul %11, %10, %cst_9 {dimension_numbers = #tpu.dot_dimension_numbers<[1], [0], [0], [1], [0, 0, 1, 1], [], []>} : vector<8x96xbf16>, vector<96x256xbf16>, vector<8x256xf32> -> vector<8x256xf32>
    %c0_10 = arith.constant 0 : index
    %c0_11 = arith.constant 0 : index
    %13 = vector.load %arg6[%c0_10, %c0_11] : memref<8x1xf32, #tpu.memory_space<vmem>>, vector<8x1xf32>
    %14 = vector.broadcast %13 : vector<8x1xf32> to vector<8x256xf32>
    %15 = arith.addf %12, %14 : vector<8x256xf32>
    %c0_12 = arith.constant 0 : index
    %c0_13 = arith.constant 0 : index
    %c0_14 = arith.constant 0 : index
    %16 = vector.load %arg7[%c0_12, %c0_13, %c0_14] : memref<1x8x256xf32, #tpu.memory_space<vmem>>, vector<1x8x256xf32>
    %17 = vector.shape_cast %16 : vector<1x8x256xf32> to vector<8x256xf32>
    %18 = vector.shape_cast %15 : vector<8x256xf32> to vector<1x8x256xf32>
    tpu.vector_store %arg7[%c0_12, %c0_13, %c0_14], %18 {strides = array<i32>} : memref<1x8x256xf32, #tpu.memory_space<vmem>>, vector<1x8x256xf32>,
    return
  }
  func.func @transform_0(%arg0: i32, %arg1: i32) -> (i32, i32, i32) {
    %c0_i32 = arith.constant 0 : i32
    %c0_i32_0 = arith.constant 0 : i32
    return %arg0, %c0_i32, %arg1 : i32, i32, i32
  }
  func.func @transform_1(%arg0: i32, %arg1: i32) -> (i32, i32) {
    %c0_i32 = arith.constant 0 : i32
    %c0_i32_0 = arith.constant 0 : i32
    %c0_i32_1 = arith.constant 0 : i32
    return %c0_i32, %c0_i32_0 : i32, i32
  }
  func.func @transform_2(%arg0: i32, %arg1: i32) -> (i32, i32) {
    %c0_i32 = arith.constant 0 : i32
    %c0_i32_0 = arith.constant 0 : i32
    %c0_i32_1 = arith.constant 0 : i32
    return %c0_i32, %c0_i32_0 : i32, i32
  }
  func.func @transform_3(%arg0: i32, %arg1: i32) -> (i32, i32) {
    %c0_i32 = arith.constant 0 : i32
    %c0_i32_0 = arith.constant 0 : i32
    %c0_i32_1 = arith.constant 0 : i32
    return %c0_i32, %c0_i32_0 : i32, i32
  }
  func.func @transform_4(%arg0: i32, %arg1: i32) -> (i32, i32) {
    %c0_i32 = arith.constant 0 : i32
    %c0_i32_0 = arith.constant 0 : i32
    %c0_i32_1 = arith.constant 0 : i32
    return %c0_i32, %c0_i32_0 : i32, i32
  }
  func.func @transform_5(%arg0: i32, %arg1: i32) -> (i32, i32, i32) {
    %c0_i32 = arith.constant 0 : i32
    %c0_i32_0 = arith.constant 0 : i32
    return %arg0, %c0_i32, %arg1 : i32, i32, i32
  }
}

</mosaic_0001>

<llo_original>
// kernel: tpu_custom_call.1
$region0: #{tpu_custom_call.1}
  #allocation0 [shape = 'u32[]', space=smem, size = 0x4, offset = 0x4, fixed_abs, tag = 'smem constant byte address 0x4 - core index']
  #allocation1 [shape = 'u32[144,128]{1,0:T(1,128)}', space=vmem, size = 0x12000, scoped, tag = 'internal scratch']
  %s0 = inlined_call_operand.hbm [shape: f32[2,96,256], index: 0, kind: input, shape index: {}]
  %s1 = inlined_call_operand.vmem [shape: bf16[96,96], index: 1, kind: input, shape index: {}]
  %s2 = inlined_call_operand.vmem [shape: f32[96,1], index: 2, kind: input, shape index: {}]
  %s3 = inlined_call_operand.vmem [shape: bf16[8,96], index: 3, kind: input, shape index: {}]
  %s4 = inlined_call_operand.vmem [shape: f32[8,1], index: 4, kind: input, shape index: {}]
  %s5 = inlined_call_operand.hbm [shape: f32[2,8,256], index: 5, kind: output, shape index: {}]
  %s6 = sld [smem:[#allocation0]]
  $region57: #{tpu_custom_call.1} parent=0
    _
  %s8 = ssub.s32 1, %s6
  %s9 = scalar_select 0, %s8, %s6
  $region1: #{tpu_custom_call.1} parent=0
    #allocation2 [shape = 'u8[196608]{0}', space=vmem, size = 0x30000, scoped, tag = 'input window, operand 0']
    #allocation3 [shape = 's32[2]{0}', space=sflag, size = 0x8, scoped, tag = 'scoped memory for tpu_custom_call.1']
    #allocation4 [shape = 's32[2]{0}', space=sflag, size = 0x8, scoped, tag = 'scoped memory for tpu_custom_call.1']
    #allocation5 [shape = 'u8[16384]{0}', space=vmem, size = 0x4000, scoped, tag = 'output window, operand 0']
    %10 = vsyncpa [#allocation3], 0
    %s11 = scalar_lea.sflag [#allocation3], 1
    %12 = vsyncpa %s11, 0
    %13 = vsyncpa [#allocation4], 0
    %s14 = scalar_lea.sflag [#allocation4], 1
    %15 = vsyncpa %s14, 0
    loop: start=0, step=1, limit=4
    $region2: #{tpu_custom_call.1} parent=1 // loop_pre_header
      _
    $region3: #{tpu_custom_call.1} parent=1 // loop_header
      %s17 = sphi 0, %s21
      %p18 = scmp.ge.s32.totalorder %s17, 4
      %s24 = sphi 0, %s36
      %s25 = sphi 0, %s32
      %s26 = sphi 0, %s24
      %s27 = sphi 0, %s25
      %s28 = sphi 0, %s26
      %s29 = sphi 0, %s27
      %s41 = sphi 0, %s43
      %s44 = sphi 0, %s41
      %s45 = sphi 0, %s44
      %s61 = sphi 0, %s45
      %s65 = sphi 0, %s65
      %s67 = sphi 0, %s65
      %s68 = sphi 0, %s67
      %s82 = sphi 0, %s68
      %s86 = sphi 0, %s86
      %s88 = sphi 0, %s86
      %s89 = sphi 0, %s88
      %s103 = sphi 0, %s89
      %s107 = sphi 0, %s107
      %s109 = sphi 0, %s107
      %s110 = sphi 0, %s109
      %s124 = sphi 0, %s110
      %s128 = sphi 0, %s128
      %s130 = sphi 0, %s128
      %s131 = sphi 0, %s130
      %s145 = sphi 0, %s131
      %s153 = sphi 0, %s155
      %s156 = sphi 0, %s153
      %s157 = sphi 0, %s156
      %s173 = sphi 0, %s157
    $region4: #{tpu_custom_call.1} parent=1 // loop_header_branch
      %20 = sbr.rel (%p18) target = $region8
    $region5: #{tpu_custom_call.1} parent=1 // loop_body
      %s22 = ssub.s32 %s17, 1
      %s23 = ssub.s32 %s17, 2
      %s30 = sadd.s32 1, %s25
      %p31 = scmp.ge.s32.totalorder %s30, 1
      %s32 = scalar_select %p31, 0, %s30
      %s33 = sadd.s32 1, %s24
      %s34 = scalar_select %p31, %s33, %s24
      %p35 = scmp.ge.s32.totalorder %s34, 2
      %s36 = scalar_select %p35, 0, %s34
      %s37 = ssub.s32 %s24, %s36
      %s38 = ssub.s32 %s25, %s32
      %s39 = sor.u32 %s37, %s38
      %p40 = scmp.eq.s32.totalorder %s39, 0
      %s42 = sadd.s32 %s41, 1
      %s43 = scalar_select %p40, %s41, %s42
      %p46 = pneg %p40
      %p47 = scmp.eq.s32.totalorder %s17, 1
      %p48 = por %p46, %p47
      %p49 = scmp.ne.s32.totalorder %s41, %s44
      %p50 = scmp.eq.s32.totalorder %s17, 0
      %p51 = por %p49, %p50
      %p52 = scmp.ne.s32.totalorder %s41, %s44
      %p53 = scmp.eq.s32.totalorder %s22, 1
      %p54 = por %p52, %p53
      %p55 = scmp.ne.s32.totalorder %s44, %s45
      %p56 = scmp.eq.s32.totalorder %s22, 0
      %p57 = por %p55, %p56
      %p58 = scmp.ne.s32.totalorder %s44, %s45
      %p59 = scmp.eq.s32.totalorder %s23, 1
      %p60 = por %p58, %p59
      %p62 = scmp.ne.s32.totalorder %s45, %s61
      %p63 = scmp.eq.s32.totalorder %s23, 0
      %p64 = por %p62, %p63
      %s66 = sadd.s32 %s65, 1
      %p69 = scmp.eq.s32.totalorder %s17, 1
      %p70 = scmp.ne.s32.totalorder %s65, %s67
      %p71 = scmp.eq.s32.totalorder %s17, 0
      %p72 = por %p70, %p71
      %p73 = scmp.ne.s32.totalorder %s65, %s67
      %p74 = scmp.eq.s32.totalorder %s22, 1
      %p75 = por %p73, %p74
      %p76 = scmp.ne.s32.totalorder %s67, %s68
      %p77 = scmp.eq.s32.totalorder %s22, 0
      %p78 = por %p76, %p77
      %p79 = scmp.ne.s32.totalorder %s67, %s68
      %p80 = scmp.eq.s32.totalorder %s23, 1
      %p81 = por %p79, %p80
      %p83 = scmp.ne.s32.totalorder %s68, %s82
      %p84 = scmp.eq.s32.totalorder %s23, 0
      %p85 = por %p83, %p84
      %s87 = sadd.s32 %s86, 1
      %p90 = scmp.eq.s32.totalorder %s17, 1
      %p91 = scmp.ne.s32.totalorder %s86, %s88
      %p92 = scmp.eq.s32.totalorder %s17, 0
      %p93 = por %p91, %p92
      %p94 = scmp.ne.s32.totalorder %s86, %s88
      %p95 = scmp.eq.s32.totalorder %s22, 1
      %p96 = por %p94, %p95
      %p97 = scmp.ne.s32.totalorder %s88, %s89
      %p98 = scmp.eq.s32.totalorder %s22, 0
      %p99 = por %p97, %p98
      %p100 = scmp.ne.s32.totalorder %s88, %s89
      %p101 = scmp.eq.s32.totalorder %s23, 1
      %p102 = por %p100, %p101
      %p104 = scmp.ne.s32.totalorder %s89, %s103
      %p105 = scmp.eq.s32.totalorder %s23, 0
      %p106 = por %p104, %p105
      %s108 = sadd.s32 %s107, 1
      %p111 = scmp.eq.s32.totalorder %s17, 1
      %p112 = scmp.ne.s32.totalorder %s107, %s109
      %p113 = scmp.eq.s32.totalorder %s17, 0
      %p114 = por %p112, %p113
      %p115 = scmp.ne.s32.totalorder %s107, %s109
      %p116 = scmp.eq.s32.totalorder %s22, 1
      %p117 = por %p115, %p116
      %p118 = scmp.ne.s32.totalorder %s109, %s110
      %p119 = scmp.eq.s32.totalorder %s22, 0
      %p120 = por %p118, %p119
      %p121 = scmp.ne.s32.totalorder %s109, %s110
      %p122 = scmp.eq.s32.totalorder %s23, 1
      %p123 = por %p121, %p122
      %p125 = scmp.ne.s32.totalorder %s110, %s124
      %p126 = scmp.eq.s32.totalorder %s23, 0
      %p127 = por %p125, %p126
      %s129 = sadd.s32 %s128, 1
      %p132 = scmp.eq.s32.totalorder %s17, 1
      %p133 = scmp.ne.s32.totalorder %s128, %s130
      %p134 = scmp.eq.s32.totalorder %s17, 0
      %p135 = por %p133, %p134
      %p136 = scmp.ne.s32.totalorder %s128, %s130
      %p137 = scmp.eq.s32.totalorder %s22, 1
      %p138 = por %p136, %p137
      %p139 = scmp.ne.s32.totalorder %s130, %s131
      %p140 = scmp.eq.s32.totalorder %s22, 0
      %p141 = por %p139, %p140
      %p142 = scmp.ne.s32.totalorder %s130, %s131
      %p143 = scmp.eq.s32.totalorder %s23, 1
      %p144 = por %p142, %p143
      %p146 = scmp.ne.s32.totalorder %s131, %s145
      %p147 = scmp.eq.s32.totalorder %s23, 0
      %p148 = por %p146, %p147
      %s149 = ssub.s32 %s24, %s36
      %s150 = ssub.s32 %s25, %s32
      %s151 = sor.u32 %s149, %s150
      %p152 = scmp.eq.s32.totalorder %s151, 0
      %s154 = sadd.s32 %s153, 1
      %s155 = scalar_select %p152, %s153, %s154
      %p158 = pneg %p152
      %p159 = scmp.eq.s32.totalorder %s17, 1
      %p160 = por %p158, %p159
      %p161 = scmp.ne.s32.totalorder %s153, %s156
      %p162 = scmp.eq.s32.totalorder %s17, 0
      %p163 = por %p161, %p162
      %p164 = scmp.ne.s32.totalorder %s153, %s156
      %p165 = scmp.eq.s32.totalorder %s22, 1
      %p166 = por %p164, %p165
      %p167 = scmp.ne.s32.totalorder %s156, %s157
      %p168 = scmp.eq.s32.totalorder %s22, 0
      %p169 = por %p167, %p168
      %p170 = scmp.ne.s32.totalorder %s156, %s157
      %p171 = scmp.eq.s32.totalorder %s23, 1
      %p172 = por %p170, %p171
      %p174 = scmp.ne.s32.totalorder %s157, %s173
      %p175 = scmp.eq.s32.totalorder %s23, 0
      %p176 = por %p174, %p175
      %p177 = scmp.le.s32.totalorder 1, %s17
      %p178 = scmp.lt.s32.totalorder %s17, 3
      %p179 = pnand %p177, %p178
      %p180 = pneg %p179
      // Predicated region
      $region9: #{tpu_custom_call.1} parent=5 // pred_check
        _
      $region10: #{tpu_custom_call.1} parent=5 // pred_check_branch
        %182 = sbr.rel (%p179) target = $region12
      $region11: #{tpu_custom_call.1} parent=5 // pred_region
        %s183 = ssub.s32 %s17, 1
        // Predicated region
        $region13: #{tpu_custom_call.1} parent=11 // pred_check
          %p184 = pneg %p78
        $region14: #{tpu_custom_call.1} parent=11 // pred_check_branch
          %186 = sbr.rel (%p184) target = $region16
        $region15: #{tpu_custom_call.1} parent=11 // pred_region
          _
        $region16: #{tpu_custom_call.1} parent=11 // pred_fallthru
          _
        // Predicated region
        $region17: #{tpu_custom_call.1} parent=11 // pred_check
          %p187 = pneg %p99
        $region18: #{tpu_custom_call.1} parent=11 // pred_check_branch
          %189 = sbr.rel (%p187) target = $region20
        $region19: #{tpu_custom_call.1} parent=11 // pred_region
          _
        $region20: #{tpu_custom_call.1} parent=11 // pred_fallthru
          _
        // Predicated region
        $region21: #{tpu_custom_call.1} parent=11 // pred_check
          %p190 = pneg %p120
        $region22: #{tpu_custom_call.1} parent=11 // pred_check_branch
          %192 = sbr.rel (%p190) target = $region24
        $region23: #{tpu_custom_call.1} parent=11 // pred_region
          _
        $region24: #{tpu_custom_call.1} parent=11 // pred_fallthru
          _
        // Predicated region
        $region25: #{tpu_custom_call.1} parent=11 // pred_check
          %p193 = pneg %p141
        $region26: #{tpu_custom_call.1} parent=11 // pred_check_branch
          %195 = sbr.rel (%p193) target = $region28
        $region27: #{tpu_custom_call.1} parent=11 // pred_region
          _
        $region28: #{tpu_custom_call.1} parent=11 // pred_fallthru
          _
      $region12: #{tpu_custom_call.1} parent=5 // pred_fallthru
        _
      %p196 = scmp.lt.s32.totalorder %s17, 2
      // Predicated region
      $region29: #{tpu_custom_call.1} parent=5 // pred_check
        %p197 = pneg %p196
      $region30: #{tpu_custom_call.1} parent=5 // pred_check_branch
        %199 = sbr.rel (%p197) target = $region32
      $region31: #{tpu_custom_call.1} parent=5 // pred_region
        // Predicated region
        $region33: #{tpu_custom_call.1} parent=31 // pred_check
          %p200 = pneg %p51
        $region34: #{tpu_custom_call.1} parent=31 // pred_check_branch
          %202 = sbr.rel (%p200) target = $region36
        $region35: #{tpu_custom_call.1} parent=31 // pred_region
          %s203 = sand.u32 %s41, 1
          %s204 = scalar_lea.sflag [#allocation3], %s203
          %s205 = sand.u32 %s41, 1
          %s206 = smul.addr %s205, 192
          %s207 = scalar_lea.vmem [#allocation2], %s206
          %s208 = smul.u32 2, %s25
          %s210 = ssub.s32 3072, 3072
          %211 = vsyncadd %s204, %s210
          %s212 = smul.addr %s24, 24
          %s213 = sadd.s32 %s208, %s212
          %s214 = smul.addr %s213, 128
          %s215 = scalar_lea.hbm %s0, %s214
          %s216 = sshll.u32 %s207, 4
          %s217 = int_to_ptr.vmem [resolvable:$true] %s216
          %222 = dma.hbm_to_vmem [thread:$0]  %s215, 3072, %s217, %s204, 256, 256, 16
        $region36: #{tpu_custom_call.1} parent=31 // pred_fallthru
          _
      $region32: #{tpu_custom_call.1} parent=5 // pred_fallthru
        _
      %p223 = scmp.le.s32.totalorder 1, %s17
      %p224 = scmp.lt.s32.totalorder %s17, 3
      %p225 = pnand %p223, %p224
      %p226 = pneg %p225
      // Predicated region
      $region37: #{tpu_custom_call.1} parent=5 // pred_check
        _
      $region38: #{tpu_custom_call.1} parent=5 // pred_check_branch
        %228 = sbr.rel (%p225) target = $region40
      $region39: #{tpu_custom_call.1} parent=5 // pred_region
        %s229 = ssub.s32 %s17, 1
        %s230 = sand.u32 %s44, 1
        %s231 = scalar_lea.sflag [#allocation3], %s230
        %s232 = sand.u32 %s44, 1
        %s233 = smul.addr %s232, 192
        %s234 = scalar_lea.vmem [#allocation2], %s233
        // Predicated region
        $region41: #{tpu_custom_call.1} parent=39 // pred_check
          %p235 = pneg %p57
        $region42: #{tpu_custom_call.1} parent=39 // pred_check_branch
          %237 = sbr.rel (%p235) target = $region44
        $region43: #{tpu_custom_call.1} parent=39 // pred_region
          %238 = dma.done %s231, 3072
        $region44: #{tpu_custom_call.1} parent=39 // pred_fallthru
          _
        %s239 = sand.u32 %s44, 1
        %s240 = scalar_lea.sflag [#allocation3], %s239
        %s241 = sand.u32 %s44, 1
        %s242 = smul.addr %s241, 192
        %s243 = scalar_lea.vmem [#allocation2], %s242
        %p244 = pneg %p57
        %p245 = pneg %p54
        %p246 = pneg %p78
        %p247 = pneg %p75
        %p248 = pneg %p99
        %p249 = pneg %p96
        %p250 = pneg %p120
        %p251 = pneg %p117
        %p252 = pneg %p141
        %p253 = pneg %p138
        %p254 = pneg %p169
        %p255 = pneg %p166
        %s256 = sand.u32 %s156, 1
        %s257 = scalar_lea.sflag [#allocation4], %s256
        %s258 = sand.u32 %s156, 1
        %s259 = smul.addr %s258, 16
        %s260 = scalar_lea.vmem [#allocation5], %s259
        %s261 = smul.u32 2, %s27
        %s262 = smul.u32 2, %s27
        %v264 = vld [vmem:[%s234] sm:$0xff]
        %v265 = vld [vmem:[%s234 + $0x8] sm:$0xff]
        %v266 = vld [vmem:[%s234 + $0x10] sm:$0xff]
        %v267 = vld [vmem:[%s234 + $0x18] sm:$0xff]
        %v268 = vld [vmem:[%s234 + $0x20] sm:$0xff]
        %v269 = vld [vmem:[%s234 + $0x28] sm:$0xff]
        %v270 = vld [vmem:[%s234 + $0x30] sm:$0xff]
        %v271 = vld [vmem:[%s234 + $0x38] sm:$0xff]
        %v272 = vld [vmem:[%s234 + $0x40] sm:$0xff]
        %v273 = vld [vmem:[%s234 + $0x48] sm:$0xff]
        %v274 = vld [vmem:[%s234 + $0x50] sm:$0xff]
        %v275 = vld [vmem:[%s234 + $0x58] sm:$0xff]
        %v276 = vld [vmem:[%s234 + $0x60] sm:$0xff]
        %v277 = vld [vmem:[%s234 + $0x68] sm:$0xff]
        %v278 = vld [vmem:[%s234 + $0x70] sm:$0xff]
        %v279 = vld [vmem:[%s234 + $0x78] sm:$0xff]
        %v280 = vld [vmem:[%s234 + $0x80] sm:$0xff]
        %v281 = vld [vmem:[%s234 + $0x88] sm:$0xff]
        %v282 = vld [vmem:[%s234 + $0x90] sm:$0xff]
        %v283 = vld [vmem:[%s234 + $0x98] sm:$0xff]
        %v284 = vld [vmem:[%s234 + $0xa0] sm:$0xff]
        %v285 = vld [vmem:[%s234 + $0xa8] sm:$0xff]
        %v286 = vld [vmem:[%s234 + $0xb0] sm:$0xff]
        %v287 = vld [vmem:[%s234 + $0xb8] sm:$0xff]
        %v288 = vpack.c.bf16 %v266, %v264
        %v289 = vpack.c.bf16 %v267, %v265
        %v290 = vpack.c.bf16 %v270, %v268
        %v291 = vpack.c.bf16 %v271, %v269
        %v292 = vpack.c.bf16 %v274, %v272
        %v293 = vpack.c.bf16 %v275, %v273
        %v294 = vpack.c.bf16 %v278, %v276
        %v295 = vpack.c.bf16 %v279, %v277
        %v296 = vpack.c.bf16 %v282, %v280
        %v297 = vpack.c.bf16 %v283, %v281
        %v298 = vpack.c.bf16 %v286, %v284
        %v299 = vpack.c.bf16 %v287, %v285
        %v300 = vld [vmem:[%s1] sm:$0xf]
        %v301 = vld [vmem:[%s1 + $0x4] sm:$0xf]
        %v302 = vld [vmem:[%s1 + $0x8] sm:$0xf]
        %v303 = vld [vmem:[%s1 + $0xc] sm:$0xf]
        %v304 = vld [vmem:[%s1 + $0x10] sm:$0xf]
        %v305 = vld [vmem:[%s1 + $0x14] sm:$0xf]
        %v306 = vld [vmem:[%s1 + $0x18] sm:$0xf]
        %v307 = vld [vmem:[%s1 + $0x1c] sm:$0xf]
        %v308 = vld [vmem:[%s1 + $0x20] sm:$0xf]
        %v309 = vld [vmem:[%s1 + $0x24] sm:$0xf]
        %v310 = vld [vmem:[%s1 + $0x28] sm:$0xf]
        %v311 = vld [vmem:[%s1 + $0x2c] sm:$0xf]
        %v312 = vld [vmem:[%s2] sm:$0xff]
        %v313 = vld [vmem:[%s2 + $0x8] sm:$0xff]
        %v314 = vld [vmem:[%s2 + $0x10] sm:$0xff]
        %v315 = vld [vmem:[%s2 + $0x18] sm:$0xff]
        %v316 = vld [vmem:[%s2 + $0x20] sm:$0xff]
        %v317 = vld [vmem:[%s2 + $0x28] sm:$0xff]
        %v318 = vld [vmem:[%s2 + $0x30] sm:$0xff]
        %v319 = vld [vmem:[%s2 + $0x38] sm:$0xff]
        %v320 = vld [vmem:[%s2 + $0x40] sm:$0xff]
        %v321 = vld [vmem:[%s2 + $0x48] sm:$0xff]
        %v322 = vld [vmem:[%s2 + $0x50] sm:$0xff]
        %v323 = vld [vmem:[%s2 + $0x58] sm:$0xff]
        %325 = vset.pattern.permute.xlu0 0
        %326 = vperm.xlu0 %325, %v312
        %v327 = vpop.permute.xlu0 %326
        %330 = vset.pattern.permute.xlu0 0
        %331 = vperm.xlu0 %330, %v313
        %v332 = vpop.permute.xlu0 %331
        %335 = vset.pattern.permute.xlu0 0
        %336 = vperm.xlu0 %335, %v314
        %v337 = vpop.permute.xlu0 %336
        %340 = vset.pattern.permute.xlu0 0
        %341 = vperm.xlu0 %340, %v315
        %v342 = vpop.permute.xlu0 %341
        %345 = vset.pattern.permute.xlu0 0
        %346 = vperm.xlu0 %345, %v316
        %v347 = vpop.permute.xlu0 %346
        %350 = vset.pattern.permute.xlu0 0
        %351 = vperm.xlu0 %350, %v317
        %v352 = vpop.permute.xlu0 %351
        %355 = vset.pattern.permute.xlu0 0
        %356 = vperm.xlu0 %355, %v318
        %v357 = vpop.permute.xlu0 %356
        %360 = vset.pattern.permute.xlu0 0
        %361 = vperm.xlu0 %360, %v319
        %v362 = vpop.permute.xlu0 %361
        %365 = vset.pattern.permute.xlu0 0
        %366 = vperm.xlu0 %365, %v320
        %v367 = vpop.permute.xlu0 %366
        %370 = vset.pattern.permute.xlu0 0
        %371 = vperm.xlu0 %370, %v321
        %v372 = vpop.permute.xlu0 %371
        %375 = vset.pattern.permute.xlu0 0
        %376 = vperm.xlu0 %375, %v322
        %v377 = vpop.permute.xlu0 %376
        %380 = vset.pattern.permute.xlu0 0
        %381 = vperm.xlu0 %380, %v323
        %v382 = vpop.permute.xlu0 %381
        %v396 = vunpack.c.l.b16 %v300
        %v397 = vunpack.c.l.b16 %v301
        %v398 = vunpack.c.l.b16 %v302
        %v399 = vunpack.c.l.b16 %v303
        %v400 = vunpack.c.l.b16 %v304
        %v401 = vunpack.c.l.b16 %v305
        %v402 = vunpack.c.l.b16 %v306
        %v403 = vunpack.c.l.b16 %v307
        %v404 = vunpack.c.l.b16 %v308
        %v405 = vunpack.c.l.b16 %v309
        %v406 = vunpack.c.l.b16 %v310
        %v407 = vunpack.c.l.b16 %v311
        %v408 = vpack.c.b16 %v397, %v396
        %v409 = vpack.c.b16 %v399, %v398
        %v410 = vpack.c.b16 %v401, %v400
        %v411 = vpack.c.b16 %v403, %v402
        %v412 = vpack.c.b16 %v405, %v404
        %v413 = vpack.c.b16 %v407, %v406
        %vm414 = vcmask 785408
        %v416 = vsel %vm414, %v408, 0
        %v419 = vsel %vm414, %v409, 0
        %v422 = vsel %vm414, %v410, 0
        %v425 = vsel %vm414, %v411, 0
        %v428 = vsel %vm414, %v412, 0
        %v431 = vsel %vm414, %v413, 0
        %433 = vmatprep.subr.bf16.mxu0 %v289
        %434 = vmatpush1.bf16.msra.mxu0 %v288
        %435 = vmatprep.subr.bf16.mxu0 %v291
        %436 = vmatpush1.bf16.msra.mxu0 %v290
        %437 = vmatprep.subr.bf16.mxu0 %v293
        %438 = vmatpush1.bf16.msra.mxu0 %v292
        %439 = vmatprep.subr.bf16.mxu0 %v295
        %440 = vmatpush1.bf16.msra.mxu0 %v294
        %441 = vmatprep.subr.bf16.mxu0 %v297
        %442 = vmatpush1.bf16.msra.mxu0 %v296
        %443 = vmatprep.subr.bf16.mxu0 %v299
        %444 = vmatpush1.bf16.msra.mxu0 %v298
        %445 = vmatprep.subr.bf16.mxu0 0
        %446 = vmatpush1.bf16.msra.mxu0 0
        %447 = vmatprep.subr.bf16.mxu0 0
        %448 = vmatpush1.bf16.msra.mxu0 0
        %449 = vmatprep.subr.bf16.mxu0 0
        %450 = vmatpush1.bf16.msra.mxu0 0
        %451 = vmatprep.subr.bf16.mxu0 0
        %452 = vmatpush1.bf16.msra.mxu0 0
        %453 = vmatprep.subr.bf16.mxu0 0
        %454 = vmatpush1.bf16.msra.mxu0 0
        %455 = vmatprep.subr.bf16.mxu0 0
        %456 = vmatpush1.bf16.msra.mxu0 0
        %457 = vmatprep.subr.bf16.mxu0 0
        %458 = vmatpush1.bf16.msra.mxu0 0
        %459 = vmatprep.subr.bf16.mxu0 0
        %460 = vmatpush1.bf16.msra.mxu0 0
        %461 = vmatprep.subr.bf16.mxu0 0
        %462 = vmatpush1.bf16.msra.mxu0 0
        %463 = vmatprep.subr.bf16.mxu0 0
        %464 = vmatpush1.bf16.msra.mxu0 0
        %465 = vmatprep.mubr.bf16.mxu0 0
        %466 = vmatmul.mubr.bf16.gmra.mrb[0].mxu0 %v416
        %v467 = vpop.f32.mrb[0].mxu0
        %v468 = vadd.f32 %v327, %v467
        %v469 = vpop.f32.mrb[0].mxu0
        %v470 = vadd.f32 %v327, %v469
        %v471 = vpop.f32.mrb[0].mxu0
        %v472 = vadd.f32 %v332, %v471
        %v473 = vpop.f32.mrb[0].mxu0
        %v474 = vadd.f32 %v332, %v473
        %475 = vmatprep.mubr.bf16.mxu0 0
        %476 = vmatmul.mubr.bf16.gmra.mrb[0].mxu0 %v419
        %v477 = vpop.f32.mrb[0].mxu0
        %v478 = vadd.f32 %v337, %v477
        %v479 = vpop.f32.mrb[0].mxu0
        %v480 = vadd.f32 %v337, %v479
        %v481 = vpop.f32.mrb[0].mxu0
        %v482 = vadd.f32 %v342, %v481
        %v483 = vpop.f32.mrb[0].mxu0
        %v484 = vadd.f32 %v342, %v483
        %485 = vmatprep.mubr.bf16.mxu0 0
        %486 = vmatmul.mubr.bf16.gmra.mrb[0].mxu0 %v422
        %v487 = vpop.f32.mrb[0].mxu0
        %v488 = vadd.f32 %v347, %v487
        %v489 = vpop.f32.mrb[0].mxu0
        %v490 = vadd.f32 %v347, %v489
        %v491 = vpop.f32.mrb[0].mxu0
        %v492 = vadd.f32 %v352, %v491
        %v493 = vpop.f32.mrb[0].mxu0
        %v494 = vadd.f32 %v352, %v493
        %495 = vmatprep.mubr.bf16.mxu0 0
        %496 = vmatmul.mubr.bf16.gmra.mrb[0].mxu0 %v425
        %v497 = vpop.f32.mrb[0].mxu0
        %v498 = vadd.f32 %v357, %v497
        %v499 = vpop.f32.mrb[0].mxu0
        %v500 = vadd.f32 %v357, %v499
        %v501 = vpop.f32.mrb[0].mxu0
        %v502 = vadd.f32 %v362, %v501
        %v503 = vpop.f32.mrb[0].mxu0
        %v504 = vadd.f32 %v362, %v503
        %505 = vmatprep.mubr.bf16.mxu0 0
        %506 = vmatmul.mubr.bf16.gmra.mrb[0].mxu0 %v428
        %v507 = vpop.f32.mrb[0].mxu0
        %v508 = vadd.f32 %v367, %v507
        %v509 = vpop.f32.mrb[0].mxu0
        %v510 = vadd.f32 %v367, %v509
        %v511 = vpop.f32.mrb[0].mxu0
        %v512 = vadd.f32 %v372, %v511
        %v513 = vpop.f32.mrb[0].mxu0
        %v514 = vadd.f32 %v372, %v513
        %515 = vmatprep.mubr.bf16.mxu0 0
        %516 = vmatmul.mubr.bf16.gmra.mrb[0].mxu0 %v431
        %v517 = vpop.f32.mrb[0].mxu0
        %v518 = vadd.f32 %v377, %v517
        %v519 = vpop.f32.mrb[0].mxu0
        %v520 = vadd.f32 %v377, %v519
        %v521 = vpop.f32.mrb[0].mxu0
        %v522 = vadd.f32 %v382, %v521
        %v523 = vpop.f32.mrb[0].mxu0
        %v524 = vadd.f32 %v382, %v523
        %525 = vdwg.mxu0
        %v526 = vmax.f32 %v468, 0.0
        %v527 = vmax.f32 %v470, 0.0
        %v528 = vmax.f32 %v472, 0.0
        %v529 = vmax.f32 %v474, 0.0
        %v530 = vmax.f32 %v478, 0.0
        %v531 = vmax.f32 %v480, 0.0
        %v532 = vmax.f32 %v482, 0.0
        %v533 = vmax.f32 %v484, 0.0
        %v534 = vmax.f32 %v488, 0.0
        %v535 = vmax.f32 %v490, 0.0
        %v536 = vmax.f32 %v492, 0.0
        %v537 = vmax.f32 %v494, 0.0
        %v538 = vmax.f32 %v498, 0.0
        %v539 = vmax.f32 %v500, 0.0
        %v540 = vmax.f32 %v502, 0.0
        %v541 = vmax.f32 %v504, 0.0
        %v542 = vmax.f32 %v508, 0.0
        %v543 = vmax.f32 %v510, 0.0
        %v544 = vmax.f32 %v512, 0.0
        %v545 = vmax.f32 %v514, 0.0
        %v546 = vmax.f32 %v518, 0.0
        %v547 = vmax.f32 %v520, 0.0
        %v548 = vmax.f32 %v522, 0.0
        %v549 = vmax.f32 %v524, 0.0
        %v550 = vpack.c.bf16 %v528, %v526
        %v551 = vpack.c.bf16 %v529, %v527
        %v552 = vpack.c.bf16 %v532, %v530
        %v553 = vpack.c.bf16 %v533, %v531
        %v554 = vpack.c.bf16 %v536, %v534
        %v555 = vpack.c.bf16 %v537, %v535
        %v556 = vpack.c.bf16 %v540, %v538
        %v557 = vpack.c.bf16 %v541, %v539
        %v558 = vpack.c.bf16 %v544, %v542
        %v559 = vpack.c.bf16 %v545, %v543
        %v560 = vpack.c.bf16 %v548, %v546
        %v561 = vpack.c.bf16 %v549, %v547
        %v562 = vld [vmem:[%s3] sm:$0xf]
        %v563 = vld [vmem:[%s4] sm:$0xff]
        %565 = vset.pattern.permute.xlu0 0
        %566 = vperm.xlu0 %565, %v563
        %v567 = vpop.permute.xlu0 %566
        %v570 = vsel %vm414, %v562, 0
        %572 = vmatprep.subr.bf16.mxu0 %v551
        %573 = vmatpush1.bf16.msra.mxu0 %v550
        %574 = vmatprep.subr.bf16.mxu0 %v553
        %575 = vmatpush1.bf16.msra.mxu0 %v552
        %576 = vmatprep.subr.bf16.mxu0 %v555
        %577 = vmatpush1.bf16.msra.mxu0 %v554
        %578 = vmatprep.subr.bf16.mxu0 %v557
        %579 = vmatpush1.bf16.msra.mxu0 %v556
        %580 = vmatprep.subr.bf16.mxu0 %v559
        %581 = vmatpush1.bf16.msra.mxu0 %v558
        %582 = vmatprep.subr.bf16.mxu0 %v561
        %583 = vmatpush1.bf16.msra.mxu0 %v560
        %584 = vmatprep.subr.bf16.mxu0 0
        %585 = vmatpush1.bf16.msra.mxu0 0
        %586 = vmatprep.subr.bf16.mxu0 0
        %587 = vmatpush1.bf16.msra.mxu0 0
        %588 = vmatprep.subr.bf16.mxu0 0
        %589 = vmatpush1.bf16.msra.mxu0 0
        %590 = vmatprep.subr.bf16.mxu0 0
        %591 = vmatpush1.bf16.msra.mxu0 0
        %592 = vmatprep.subr.bf16.mxu0 0
        %593 = vmatpush1.bf16.msra.mxu0 0
        %594 = vmatprep.subr.bf16.mxu0 0
        %595 = vmatpush1.bf16.msra.mxu0 0
        %596 = vmatprep.subr.bf16.mxu0 0
        %597 = vmatpush1.bf16.msra.mxu0 0
        %598 = vmatprep.subr.bf16.mxu0 0
        %599 = vmatpush1.bf16.msra.mxu0 0
        %600 = vmatprep.subr.bf16.mxu0 0
        %601 = vmatpush1.bf16.msra.mxu0 0
        %602 = vmatprep.subr.bf16.mxu0 0
        %603 = vmatpush1.bf16.msra.mxu0 0
        %604 = vmatprep.mubr.bf16.mxu0 0
        %605 = vmatmul.mubr.bf16.gmra.mrb[0].mxu0 %v570
        %v606 = vpop.f32.mrb[0].mxu0
        %v607 = vadd.f32 %v567, %v606
        %v608 = vpop.f32.mrb[0].mxu0
        %v609 = vadd.f32 %v567, %v608
        %v610 = vpop.f32.mrb[0].mxu0
        %v611 = vpop.f32.mrb[0].mxu0
        %612 = vdwg.mxu0
        %613 = vst [vmem:[%s260] sm:$0xff] %v607
        %614 = vst [vmem:[%s260 + $0x8] sm:$0xff] %v609
        %s615 = sand.u32 %s156, 1
        %s616 = scalar_lea.sflag [#allocation4], %s615
        %s617 = sand.u32 %s156, 1
        %s618 = smul.addr %s617, 16
        %s619 = scalar_lea.vmem [#allocation5], %s618
        // Predicated region
        $region45: #{tpu_custom_call.1} parent=39 // pred_check
          %p620 = pneg %p166
        $region46: #{tpu_custom_call.1} parent=39 // pred_check_branch
          %622 = sbr.rel (%p620) target = $region48
        $region47: #{tpu_custom_call.1} parent=39 // pred_region
          %s623 = smul.u32 2, %s27
          %s625 = ssub.s32 256, 256
          %626 = vsyncadd %s616, %s625
          %s627 = smul.addr %s26, 2
          %s628 = sadd.s32 %s623, %s627
          %s629 = smul.addr %s628, 128
          %s630 = scalar_lea.hbm %s5, %s629
          %s632 = sshll.u32 %s619, 4
          %s633 = int_to_ptr.vmem [resolvable:$true] %s632
          %635 = dma.vmem_to_hbm [thread:$0]  %s633, 256, %s630, %s616
        $region48: #{tpu_custom_call.1} parent=39 // pred_fallthru
          _
      $region40: #{tpu_custom_call.1} parent=5 // pred_fallthru
        _
      %p636 = scmp.le.s32.totalorder 2, %s17
      // Predicated region
      $region49: #{tpu_custom_call.1} parent=5 // pred_check
        %p637 = pneg %p636
      $region50: #{tpu_custom_call.1} parent=5 // pred_check_branch
        %639 = sbr.rel (%p637) target = $region52
      $region51: #{tpu_custom_call.1} parent=5 // pred_region
        %s640 = ssub.s32 %s17, 2
        // Predicated region
        $region53: #{tpu_custom_call.1} parent=51 // pred_check
          %p641 = pneg %p172
        $region54: #{tpu_custom_call.1} parent=51 // pred_check_branch
          %643 = sbr.rel (%p641) target = $region56
        $region55: #{tpu_custom_call.1} parent=51 // pred_region
          %s644 = sand.u32 %s157, 1
          %s645 = scalar_lea.sflag [#allocation4], %s644
          %s646 = sand.u32 %s157, 1
          %s647 = smul.addr %s646, 16
          %s648 = scalar_lea.vmem [#allocation5], %s647
          %649 = dma.done %s645, 256
        $region56: #{tpu_custom_call.1} parent=51 // pred_fallthru
          _
      $region52: #{tpu_custom_call.1} parent=5 // pred_fallthru
        _
    $region6: #{tpu_custom_call.1} parent=1 // loop_footer
      %s21 = sadd.s32 1, %s17
    $region7: #{tpu_custom_call.1} parent=1 // loop_footer_branch
      %16 = sbr.rel target = $region3
    $region8: #{tpu_custom_call.1} parent=1 // loop_exit
      _
    %650 = vsyncpa [#allocation3], 1
    %s651 = scalar_lea.sflag [#allocation3], 1
    %652 = vsyncpa %s651, 1
    %653 = vsyncpa [#allocation4], 1
    %s654 = scalar_lea.sflag [#allocation4], 1
    %655 = vsyncpa %s654, 1

</llo_original>
